<compile_context>
chip_gen: v5e
topology: v5e:2x2
jax: 0.10.0
libtpu: 0.0.40
codegen_flags: <defaults>
</compile_context>

<pallas_src>
import math

import jax
import jax.numpy as jnp
from jax import lax
from jax.experimental import pallas as pl
from jax.experimental.pallas import tpu as pltpu

_LANE = 128
_MAX_FOLD_WEIGHT_BYTES = 2 * 1024 * 1024  # cap on the block-diagonal folded weight


def _sublane(dtype) -> int:
    """Sublane multiple for a dtype: f32 -> 8, bf16 -> 16, int8/fp8 -> 32."""
    itemsize = jnp.dtype(dtype).itemsize
    return max(8, 8 * (4 // itemsize))


def _vmem_capacity_bytes() -> int:
    """Per-core VMEM capacity; conservative fallback if the query is unavailable."""
    try:
        return int(pltpu.get_tpu_info().vmem_capacity_bytes)
    except Exception:
        return 64 * 1024 * 1024  # v7x per-TC floor; safe on every generation


def _embedding_kernel(x_ref, w_ref, b_ref, o_ref):
    # x_ref: (TM, d_lane) row-tile of the (folded) flattened input
    # w_ref: (d_lane, d_lane) weight (plain or block-diagonal), VMEM-resident
    # b_ref: (1, d_lane) bias, VMEM-resident
    # o_ref: (TM, d_lane) output row-tile
    #
    # Contract X's feature axis with the weight's *input* axis -> X @ W^T,
    # without materializing a transposed weight in the wrapper.
    acc = lax.dot_general(
        x_ref[...], w_ref[...],
        dimension_numbers=(((1,), (1,)), ((), ())),
        preferred_element_type=jnp.float32)
    o_ref[...] = (acc + b_ref[...].astype(jnp.float32)).astype(o_ref.dtype)


def prepare_custom_embedding(weight, bias, n_dims: int):
    """One-time per-layer prep: build the lane-dense (block-diagonal) weight/bias.

    Hoisted out of the per-call path so jnp.kron / jnp.tile are not re-emitted
    on every forward invocation.

    Returns (w_eff, b_eff, g) where g is the number of rows folded into lanes.
    """
    d = n_dims
    itemsize = jnp.dtype(weight.dtype).itemsize

    if d % _LANE == 0:
        g = 1  # already lane-dense, no fold needed
    else:
        d_lane = (d * _LANE) // math.gcd(d, _LANE)  # lcm(d, 128)
        g = d_lane // d
        if d_lane * d_lane * itemsize > _MAX_FOLD_WEIGHT_BYTES:
            # Folded weight too large to keep VMEM-resident; fall back to plain.
            # TODO(synk): tile the weight over K/N for very large non-128-multiple d.
            g = 1

    if g == 1:
        w_eff = weight
        b_eff = bias.reshape(1, d)
    else:
        # Block-diagonal weight: Wbd[a*D+o, b*D+i] = eye[a, b] * weight[o, i].
        w_eff = jnp.kron(jnp.eye(g, dtype=weight.dtype), weight)   # (g*d, g*d)
        b_eff = jnp.tile(bias, g).reshape(1, g * d)
    return w_eff, b_eff, g


def custom_embedding_apply(x, w_eff, b_eff, g: int, n_channels: int, n_dims: int):
    """Pallas equivalent of CustomEmbedding.forward, using prepared params."""
    d = n_dims
    d_lane = g * d

    x_flat = x.reshape(-1, d)                    # (M, D), PyTorch reshape semantics
    m = x_flat.shape[0]

    # Pad M up to a multiple of G so the lane-dense fold always applies
    # (avoids the masked, d-wide partial-store path entirely).
    pad = (-m) % g
    if pad:
        x_flat = jnp.concatenate(
            [x_flat, jnp.zeros((pad, d), dtype=x_flat.dtype)], axis=0)
    m_pad = m + pad
    m_eff = m_pad // g
    x2 = x_flat.reshape(m_eff, d_lane)           # fold G rows into the lane axis

    itemsize = jnp.dtype(x2.dtype).itemsize
    sub = _sublane(x2.dtype)

    # --- Generation-aware VMEM budgeting --------------------------------------
    vmem_cap = _vmem_capacity_bytes()
    vmem_ceiling = min(int(0.75 * vmem_cap), 100 * 1024 * 1024)   # leave headroom

    w_bytes = int(w_eff.size) * jnp.dtype(w_eff.dtype).itemsize
    b_bytes = int(b_eff.size) * jnp.dtype(b_eff.dtype).itemsize
    fixed_bytes = 2 * (w_bytes + b_bytes)        # constant-index blocks, dbl-buffered

    tile_budget = max(
        4 * 1024 * 1024,
        min(24 * 1024 * 1024, vmem_ceiling - fixed_bytes - 2 * 1024 * 1024))

    # One input row + one output row, double-buffered by the pipeline.
    bytes_per_row_dblbuf = 2 * (2 * d_lane * itemsize)
    tm_cap = max(sub, (tile_budget // bytes_per_row_dblbuf) // sub * sub)
    tm = min(m_eff, tm_cap)
    if tm < m_eff:
        tm = max(sub, (tm // sub) * sub)         # sublane-aligned partial tiles
    grid_m = pl.cdiv(m_eff, tm)

    vmem_needed = fixed_bytes + 4 * tm * d_lane * itemsize
    vmem_limit = int(min(max(int(vmem_needed * 1.25), 32 * 1024 * 1024), vmem_ceiling))

    out = pl.pallas_call(
        _embedding_kernel,
        out_shape=jax.ShapeDtypeStruct((m_eff, d_lane), x.dtype),
        grid_spec=pltpu.PrefetchScalarGridSpec(
            num_scalar_prefetch=0,
            grid=(grid_m,),
            in_specs=[
                pl.BlockSpec((tm, d_lane), lambda i: (i, 0)),       # X: pipelined over M
                pl.BlockSpec((d_lane, d_lane), lambda i: (0, 0)),   # weight: resident
                pl.BlockSpec((1, d_lane), lambda i: (0, 0)),        # bias: resident
            ],
            out_specs=pl.BlockSpec((tm, d_lane), lambda i: (i, 0)),
        ),
        compiler_params=pltpu.CompilerParams(
            dimension_semantics=("parallel",),  # rows independent
            vmem_limit_bytes=vmem_limit),
    )(x2, w_eff, b_eff)

    out = out.reshape(m_pad, d)
    if pad:
        out = out[:m]
    return out.reshape(-1, n_channels, d)


def custom_embedding(x, weight, bias, n_channels: int, n_dims: int):
    """Convenience wrapper: prepare + apply in one call."""
    w_eff, b_eff, g = prepare_custom_embedding(weight, bias, n_dims)
    return custom_embedding_apply(x, w_eff, b_eff, g, n_channels, n_dims)


if __name__ == "__main__":
    # Small, deterministic example consistent with the module's forward:
    # input (B, C, L) reshaped to (-1, n_channels, n_dims).
    # n_channels=3 with n_dims=32 exercises both the lcm lane-dense fold (G=4)
    # and the M-padding path (6 rows -> padded to 8).
    B, n_channels, n_dims = 2, 3, 32

    key = jax.random.PRNGKey(0)
    kx, kw, kb = jax.random.split(key, 3)

    x = jax.random.normal(kx, (B, n_channels, n_dims), dtype=jnp.float32)

    # Deterministic nn.Linear-style init: U(-1/sqrt(fan_in), 1/sqrt(fan_in)).
    bound = 1.0 / (n_dims ** 0.5)
    weight = jax.random.uniform(kw, (n_dims, n_dims), jnp.float32, -bound, bound)
    bias = jax.random.uniform(kb, (n_dims,), jnp.float32, -bound, bound)

    # Per-layer prep happens once; only the apply runs per forward call.
    w_eff, b_eff, g = prepare_custom_embedding(weight, bias, n_dims)
    out = custom_embedding_apply(x, w_eff, b_eff, g, n_channels, n_dims)
    out = jax.block_until_ready(out)

    # Reference check in plain JAX (same math as nn.Linear: y = x @ W^T + b).
    ref = (x.reshape(-1, n_dims) @ weight.T + bias).reshape(-1, n_channels, n_dims)
    assert out.shape == (B, n_channels, n_dims)
    assert jnp.allclose(out, ref, atol=1e-5, rtol=1e-5)

    print("KERNEL_OK")
</pallas_src>

<mosaic_0001>
module attributes {stable_mosaic.version = 11 : i64} {
  func.func @_embedding_kernel(%arg0: i32, %arg1: memref<2x128xf32, #tpu.memory_space<vmem>>, %arg2: memref<128x128xf32, #tpu.memory_space<vmem>>, %arg3: memref<1x128xf32, #tpu.memory_space<vmem>>, %arg4: memref<2x128xf32, #tpu.memory_space<vmem>>) attributes {dimension_semantics = [#tpu.dimension_semantics<parallel>], iteration_bounds = array<i64: 1>, scalar_prefetch = 0 : i64, scratch_operands = 0 : i64, tpu.core_type = #tpu.core_type<tc>, window_params = [{transform_indices = @transform_0, window_bounds = array<i64: 2, 128>}, {pipeline_mode = #tpu.pipeline_mode<synchronous>, transform_indices = @transform_1, window_bounds = array<i64: 128, 128>}, {pipeline_mode = #tpu.pipeline_mode<synchronous>, transform_indices = @transform_2, window_bounds = array<i64: 1, 128>}, {transform_indices = @transform_3, window_bounds = array<i64: 2, 128>}]} {
    %c0 = arith.constant 0 : index
    %c0_0 = arith.constant 0 : index
    %0 = vector.load %arg1[%c0, %c0_0] : memref<2x128xf32, #tpu.memory_space<vmem>>, vector<2x128xf32>
    %c0_1 = arith.constant 0 : index
    %c0_2 = arith.constant 0 : index
    %1 = vector.load %arg2[%c0_1, %c0_2] : memref<128x128xf32, #tpu.memory_space<vmem>>, vector<128x128xf32>
    %cst = arith.constant dense<0.000000e+00> : vector<2x128xf32>
    %2 = tpu.matmul %0, %1, %cst {dimension_numbers = #tpu.dot_dimension_numbers<[1], [1], [0], [0], [0, 0, 1, 0], [], []>} : vector<2x128xf32>, vector<128x128xf32>, vector<2x128xf32> -> vector<2x128xf32>
    %c0_3 = arith.constant 0 : index
    %c0_4 = arith.constant 0 : index
    %3 = vector.load %arg3[%c0_3, %c0_4] : memref<1x128xf32, #tpu.memory_space<vmem>>, vector<1x128xf32>
    %4 = vector.broadcast %3 : vector<1x128xf32> to vector<2x128xf32>
    %5 = arith.addf %2, %4 : vector<2x128xf32>
    %c0_5 = arith.constant 0 : index
    %c0_6 = arith.constant 0 : index
    %6 = vector.load %arg4[%c0_5, %c0_6] : memref<2x128xf32, #tpu.memory_space<vmem>>, vector<2x128xf32>
    tpu.vector_store %arg4[%c0_5, %c0_6], %5 {strides = array<i32>} : memref<2x128xf32, #tpu.memory_space<vmem>>, vector<2x128xf32>,
    return
  }
  func.func @transform_0(%arg0: i32) -> (i32, i32) {
    %c0_i32 = arith.constant 0 : i32
    %c0_i32_0 = arith.constant 0 : i32
    return %arg0, %c0_i32 : i32, i32
  }
  func.func @transform_1(%arg0: i32) -> (i32, i32) {
    %c0_i32 = arith.constant 0 : i32
    %c0_i32_0 = arith.constant 0 : i32
    %c0_i32_1 = arith.constant 0 : i32
    return %c0_i32, %c0_i32_0 : i32, i32
  }
  func.func @transform_2(%arg0: i32) -> (i32, i32) {
    %c0_i32 = arith.constant 0 : i32
    %c0_i32_0 = arith.constant 0 : i32
    %c0_i32_1 = arith.constant 0 : i32
    return %c0_i32, %c0_i32_0 : i32, i32
  }
  func.func @transform_3(%arg0: i32) -> (i32, i32) {
    %c0_i32 = arith.constant 0 : i32
    %c0_i32_0 = arith.constant 0 : i32
    return %arg0, %c0_i32 : i32, i32
  }
}

</mosaic_0001>

<llo_original>
// kernel: tpu_custom_call.1
$region0: #{tpu_custom_call.1}
  #allocation0 [shape = 'u32[]', space=smem, size = 0x4, offset = 0x4, fixed_abs, tag = 'smem constant byte address 0x4 - core index']
  #allocation1 [shape = 'u32[72,128]{1,0:T(1,128)}', space=vmem, size = 0x9000, scoped, tag = 'internal scratch']
  %s0 = inlined_call_operand.hbm [shape: f32[2,128], index: 0, kind: input, shape index: {}]
  %s1 = inlined_call_operand.hbm [shape: f32[128,128], index: 1, kind: input, shape index: {}]
  %s2 = inlined_call_operand.vmem [shape: f32[1,128], index: 2, kind: input, shape index: {}]
  %s3 = inlined_call_operand.hbm [shape: f32[2,128], index: 3, kind: output, shape index: {}]
  %s4 = sld [smem:[#allocation0]]
  $region30: #{tpu_custom_call.1} parent=0
    _
  %s6 = ssub.s32 1, %s4
  %s7 = scalar_select 0, %s6, %s4
  $region1: #{tpu_custom_call.1} parent=0
    #allocation2 [shape = 'u8[1024]{0}', space=vmem, size = 0x400, scoped, tag = 'input window, operand 0, single buffered']
    #allocation3 [shape = 's32[1]{0}', space=sflag, size = 0x4, scoped, tag = 'scoped memory for tpu_custom_call.1']
    #allocation4 [shape = 's32[1]{0}', space=sflag, size = 0x4, scoped, tag = 'scoped memory for tpu_custom_call.1']
    #allocation5 [shape = 'u8[65536]{0}', space=vmem, size = 0x10000, scoped, tag = 'input window, operand 1, single buffered']
    #allocation6 [shape = 's32[1]{0}', space=sflag, size = 0x4, scoped, tag = 'scoped memory for tpu_custom_call.1']
    #allocation7 [shape = 'u8[1024]{0}', space=vmem, size = 0x400, scoped, tag = 'output window, operand 0, single buffered']
    %8 = vsyncpa [#allocation3], 0
    %9 = vsyncpa [#allocation6], 0
    %10 = vsyncpa [#allocation4], 0
    // Predicated region
    $region2: #{tpu_custom_call.1} parent=1 // pred_check
      _
    $region3: #{tpu_custom_call.1} parent=1 // pred_check_branch
      %12 = sbr.rel (0) target = $region5
    $region4: #{tpu_custom_call.1} parent=1 // pred_region
      %14 = vsyncadd [#allocation3], 0
      %s16 = sshll.u32 %s0, 4
      %s17 = int_to_ptr.hbm [resolvable:$true] %s16
      %s18 = sshll.u32 [#allocation2], 4
      %s19 = int_to_ptr.vmem [resolvable:$true] %s18
      %21 = dma.hbm_to_vmem [thread:$0]  %s17, 32, %s19, [#allocation3]
    $region5: #{tpu_custom_call.1} parent=1 // pred_fallthru
      _
    // Predicated region
    $region6: #{tpu_custom_call.1} parent=1 // pred_check
      _
    $region7: #{tpu_custom_call.1} parent=1 // pred_check_branch
      %23 = sbr.rel (0) target = $region9
    $region8: #{tpu_custom_call.1} parent=1 // pred_region
      %25 = vsyncadd [#allocation6], 0
      %s26 = sshll.u32 %s1, 4
      %s27 = int_to_ptr.hbm [resolvable:$true] %s26
      %s28 = sshll.u32 [#allocation5], 4
      %s29 = int_to_ptr.vmem [resolvable:$true] %s28
      %34 = dma.hbm_to_vmem [thread:$0]  %s27, 2048, %s29, [#allocation6], 128, 128, 8
    $region9: #{tpu_custom_call.1} parent=1 // pred_fallthru
      _
    // Predicated region
    $region10: #{tpu_custom_call.1} parent=1 // pred_check
      _
    $region11: #{tpu_custom_call.1} parent=1 // pred_check_branch
      %36 = sbr.rel (0) target = $region13
    $region12: #{tpu_custom_call.1} parent=1 // pred_region
      _
    $region13: #{tpu_custom_call.1} parent=1 // pred_fallthru
      _
    // Predicated region
    $region14: #{tpu_custom_call.1} parent=1 // pred_check
      _
    $region15: #{tpu_custom_call.1} parent=1 // pred_check_branch
      %38 = sbr.rel (0) target = $region17
    $region16: #{tpu_custom_call.1} parent=1 // pred_region
      %40 = dma.done [#allocation3], 32
    $region17: #{tpu_custom_call.1} parent=1 // pred_fallthru
      _
    // Predicated region
    $region18: #{tpu_custom_call.1} parent=1 // pred_check
      _
    $region19: #{tpu_custom_call.1} parent=1 // pred_check_branch
      %42 = sbr.rel (0) target = $region21
    $region20: #{tpu_custom_call.1} parent=1 // pred_region
      %44 = dma.done [#allocation6], 2048
    $region21: #{tpu_custom_call.1} parent=1 // pred_fallthru
      _
    %v45 = vld [vmem:[#allocation2] sm:$0x3]
    %v46 = vld [vmem:[#allocation5] sm:$0xff]
    %v47 = vld [vmem:[#allocation5 + $0x8] sm:$0xff]
    %v48 = vld [vmem:[#allocation5 + $0x10] sm:$0xff]
    %v49 = vld [vmem:[#allocation5 + $0x18] sm:$0xff]
    %v50 = vld [vmem:[#allocation5 + $0x20] sm:$0xff]
    %v51 = vld [vmem:[#allocation5 + $0x28] sm:$0xff]
    %v52 = vld [vmem:[#allocation5 + $0x30] sm:$0xff]
    %v53 = vld [vmem:[#allocation5 + $0x38] sm:$0xff]
    %v54 = vld [vmem:[#allocation5 + $0x40] sm:$0xff]
    %v55 = vld [vmem:[#allocation5 + $0x48] sm:$0xff]
    %v56 = vld [vmem:[#allocation5 + $0x50] sm:$0xff]
    %v57 = vld [vmem:[#allocation5 + $0x58] sm:$0xff]
    %v58 = vld [vmem:[#allocation5 + $0x60] sm:$0xff]
    %v59 = vld [vmem:[#allocation5 + $0x68] sm:$0xff]
    %v60 = vld [vmem:[#allocation5 + $0x70] sm:$0xff]
    %v61 = vld [vmem:[#allocation5 + $0x78] sm:$0xff]
    %v62 = vld [vmem:[%s2] sm:$0x1]
    %v64 = vperm.slane %v62, 0
    %66 = vmatpush.xpose.msra.mxu0 %v61
    %67 = vmatpush.xpose.msra.mxu0 %v60
    %68 = vmatpush.xpose.msra.mxu0 %v59
    %69 = vmatpush.xpose.msra.mxu0 %v58
    %70 = vmatpush.xpose.msra.mxu0 %v57
    %71 = vmatpush.xpose.msra.mxu0 %v56
    %72 = vmatpush.xpose.msra.mxu0 %v55
    %73 = vmatpush.xpose.msra.mxu0 %v54
    %74 = vmatpush.xpose.msra.mxu0 %v53
    %75 = vmatpush.xpose.msra.mxu0 %v52
    %76 = vmatpush.xpose.msra.mxu0 %v51
    %77 = vmatpush.xpose.msra.mxu0 %v50
    %78 = vmatpush.xpose.msra.mxu0 %v49
    %79 = vmatpush.xpose.msra.mxu0 %v48
    %80 = vmatpush.xpose.msra.mxu0 %v47
    %81 = vmatpush.xpose.msra.mxu0 %v46
    %82 = vmatmul.f32.gmra.mxu0 %v45
    %v83 = vpop.f32.mrf.mxu0
    %v84 = vadd.f32 %v64, %v83
    %85 = vdwg.mxu0
    %86 = vst [vmem:[#allocation7] sm:$0x3] %v84
    // Predicated region
    $region22: #{tpu_custom_call.1} parent=1 // pred_check
      _
    $region23: #{tpu_custom_call.1} parent=1 // pred_check_branch
      %88 = sbr.rel (0) target = $region25
    $region24: #{tpu_custom_call.1} parent=1 // pred_region
      %90 = vsyncadd [#allocation4], 0
      %s92 = sshll.u32 [#allocation7], 4
      %s93 = int_to_ptr.vmem [resolvable:$true] %s92
      %s94 = sshll.u32 %s3, 4
      %s95 = int_to_ptr.hbm [resolvable:$true] %s94
      %97 = dma.vmem_to_hbm [thread:$0]  %s93, 32, %s95, [#allocation4]
    $region25: #{tpu_custom_call.1} parent=1 // pred_fallthru
      _
    // Predicated region
    $region26: #{tpu_custom_call.1} parent=1 // pred_check
      _
    $region27: #{tpu_custom_call.1} parent=1 // pred_check_branch
      %99 = sbr.rel (0) target = $region29
    $region28: #{tpu_custom_call.1} parent=1 // pred_region
      %101 = dma.done [#allocation4], 32
    $region29: #{tpu_custom_call.1} parent=1 // pred_fallthru
      _
    %102 = vsyncpa [#allocation3], 1
    %103 = vsyncpa [#allocation6], 1
    %104 = vsyncpa [#allocation4], 1

</llo_original>
